<compile_context>
chip_gen: v7x
topology: tpu7x:2x2x1
jax: 0.10.0
libtpu: 0.0.40
codegen_flags: <defaults>
</compile_context>

<pallas_src>
import functools

import jax
import jax.numpy as jnp
from jax.experimental import pallas as pl
from jax.experimental.pallas import tpu as pltpu


def _vmem_budget_bytes():
    """Scoped-VMEM budget with headroom, derived from the running chip."""
    cap = None
    try:
        cap = getattr(pltpu.get_tpu_info(), "vmem_capacity_bytes", None)
    except Exception:
        cap = None
    if not cap:
        cap = 64 * 1024 * 1024      # conservative default = v7x physical VMEM
    return int(cap) * 3 // 4        # leave headroom for compiler internals


def _pick_streaming_tile(hw, c, itemsize, target_bytes, budget_bytes):
    """Lane tile for the streaming fallback: a multiple of 128, sized so each
    block is ~target_bytes (1-2 MiB amortizes per-step overhead) while the
    ~4 double-buffered in/out blocks stay within the VMEM budget."""
    if hw <= 128:
        return hw                   # full-dim block is always legal
    per_lane = c * itemsize
    t = max(128, (target_bytes // per_lane) // 128 * 128)
    t = min(t, max(128, (budget_bytes // (4 * per_lane)) // 128 * 128))
    if t >= hw:
        return hw                   # whole spatial extent fits the budget
    return int(t)


# ----------------------------------------------------------------------------
# Fused single-pass kernel: squeeze + excite + scale on a VMEM-resident block.
# ----------------------------------------------------------------------------
def _se_fused_kernel(x_ref, w1_ref, b1_ref, w2_ref, b2_ref, o_ref, *, inv_hw):
    # x_ref/o_ref: (Bt, C, HW); w1_ref: (C, Crp); b1_ref: (1, Crp);
    # w2_ref: (Crp, C); b2_ref: (1, C).
    x = x_ref[...]
    # Squeeze: per-(sample, channel) spatial mean.  One cross-lane reduce per
    # whole sample block (not per streamed tile), so XLU cost is negligible.
    mean = jnp.sum(x, axis=-1).astype(jnp.float32) * inv_hw          # (Bt, C)
    # Excite: Linear -> ReLU -> Linear -> Sigmoid.  Lane-major (in, out)
    # weights so both matmuls are plain GEMMs with Bt on the sublane axis.
    h = jnp.dot(mean, w1_ref[...], preferred_element_type=jnp.float32)
    h = jnp.maximum(h + b1_ref[...], 0.0)                            # (Bt, Crp)
    y = jnp.dot(h, w2_ref[...], preferred_element_type=jnp.float32)
    y = jax.nn.sigmoid(y + b2_ref[...])                              # (Bt, C)
    # Scale: tiny once-per-block relayout of y, then a lane-splat broadcast.
    o_ref[...] = (x * y[:, :, None].astype(x.dtype)).astype(o_ref.dtype)


# ----------------------------------------------------------------------------
# Two-phase streaming fallback (sample too large to hold in VMEM).
# ----------------------------------------------------------------------------
def _squeeze_excite_kernel(x_ref, w1_ref, b1_ref, w2_ref, b2_ref, y_ref,
                           acc_ref, *, hw, tile):
    # x_ref: (1, C, T); w1_ref: (Crp, C); b1_ref: (Crp, 1); w2_ref: (C, Crp);
    # b2_ref: (C, 1); y_ref: (1, C, 1); acc_ref: (C, 1) f32 scratch.
    k = pl.program_id(1)

    @pl.when(k == 0)
    def _():
        acc_ref[...] = jnp.zeros_like(acc_ref)

    x = x_ref[0]                                                     # (C, T)
    if hw % tile != 0:
        # Ragged last tile: out-of-bounds lanes hold unspecified pad values.
        col = jax.lax.broadcasted_iota(jnp.int32, x.shape, 1) + k * tile
        x = jnp.where(col < hw, x, 0.0)
    # Channel-major partial sum: keepdims keeps C on the sublane axis, so no
    # per-step sublane->lane relayout is needed to feed the accumulator.
    acc_ref[...] += jnp.sum(x, axis=-1, keepdims=True).astype(jnp.float32)

    @pl.when(k == pl.num_programs(1) - 1)
    def _():
        mean = acc_ref[...] * (1.0 / hw)                             # (C, 1)
        # Channel-major excitation MLP on column vectors ((out, in) weights).
        h = jnp.dot(w1_ref[...], mean, preferred_element_type=jnp.float32)
        h = jnp.maximum(h + b1_ref[...], 0.0)                        # (Crp, 1)
        y = jnp.dot(w2_ref[...], h, preferred_element_type=jnp.float32)
        y = jax.nn.sigmoid(y + b2_ref[...])                          # (C, 1)
        y_ref[...] = y[None].astype(y_ref.dtype)                     # (1, C, 1)


def _scale_kernel(x_ref, s_ref, o_ref):
    # x_ref/o_ref: (1, C, T); s_ref: (1, C, 1) -> cheap lane-broadcast.
    o_ref[...] = (x_ref[...] * s_ref[...].astype(x_ref.dtype)).astype(o_ref.dtype)


# ----------------------------------------------------------------------------
# Wrapper
# ----------------------------------------------------------------------------
def se_block(x_nchw, w1, b1, w2, b2, *, donate_x=False, force_two_phase=False,
             stream_block_bytes=2 * 1024 * 1024):
    """Squeeze-and-Excitation forward.

    x_nchw: (B, C, H, W)
    w1: (Cr, C), b1: (Cr,)  -- nn.Linear(C, C//r) weight/bias (PyTorch (out, in))
    w2: (C, Cr), b2: (C,)   -- nn.Linear(C//r, C) weight/bias
    donate_x: alias x's HBM buffer to the output (only if x is dead afterwards).
    """
    B, C, H, W = x_nchw.shape
    HW = H * W
    Cr = w1.shape[0]
    assert w1.shape == (Cr, C) and w2.shape == (C, Cr)
    x_flat = x_nchw.reshape(B, C, HW)
    itemsize = x_flat.dtype.itemsize

    # Zero-pad the bottleneck dim up to a sublane multiple (>= 8).  Exact:
    # padded hidden units see zero weights/bias (relu(0)=0) and multiply zero
    # rows/cols of the second Linear.
    Crp = max(8, ((Cr + 7) // 8) * 8)

    budget = _vmem_budget_bytes()
    io_alias = {0: 0} if donate_x else {}

    # -------- Fused single-pass path (the common case) ----------------------
    sample_bytes = C * HW * itemsize
    usable = max(0, budget - 2 * 1024 * 1024)   # slack for weights / temps
    # x-in and x-out blocks are each double-buffered -> ~4 live block copies.
    max_bt = usable // (4 * sample_bytes) if sample_bytes else B

    if not force_two_phase and max_bt >= 1:
        # Smallest divisor of B whose block reaches ~stream_block_bytes, else
        # the largest divisor that still fits the VMEM budget.
        bt = 1
        for d in range(1, B + 1):
            if B % d == 0 and d <= max_bt:
                bt = d
                if d * sample_bytes >= stream_block_bytes:
                    break

        # Lane-major (in, out) padded weights for the fused MLP.
        w1p = jnp.zeros((C, Crp), jnp.float32).at[:, :Cr].set(w1.T)
        b1p = jnp.zeros((1, Crp), jnp.float32).at[0, :Cr].set(b1)
        w2p = jnp.zeros((Crp, C), jnp.float32).at[:Cr, :].set(w2.T)
        b2p = b2.reshape(1, C).astype(jnp.float32)

        # TODO(synk): for B == 1 on v7x (2 TensorCores) the single parallel
        # axis leaves one core idle; a split of HW with per-core partial sums
        # would recover it.
        # TODO(synk): sweep pipeline_mode=pl.Buffered(3) on the x/out specs
        # once tiles are right-sized (small win on v7x only).
        out = pl.pallas_call(
            functools.partial(_se_fused_kernel, inv_hw=1.0 / HW),
            out_shape=jax.ShapeDtypeStruct((B, C, HW), x_flat.dtype),
            grid_spec=pltpu.PrefetchScalarGridSpec(
                num_scalar_prefetch=0,
                grid=(B // bt,),
                in_specs=[
                    pl.BlockSpec((bt, C, HW), lambda b: (b, 0, 0)),
                    pl.BlockSpec((C, Crp), lambda b: (0, 0)),
                    pl.BlockSpec((1, Crp), lambda b: (0, 0)),
                    pl.BlockSpec((Crp, C), lambda b: (0, 0)),
                    pl.BlockSpec((1, C), lambda b: (0, 0)),
                ],
                out_specs=pl.BlockSpec((bt, C, HW), lambda b: (b, 0, 0)),
            ),
            compiler_params=pltpu.CompilerParams(
                dimension_semantics=("parallel",),
                vmem_limit_bytes=budget,
            ),
            input_output_aliases=io_alias,
        )(x_flat, w1p, b1p, w2p, b2p)
        return out.reshape(B, C, H, W)

    # -------- Two-phase streaming fallback (sample exceeds VMEM budget) -----
    # Channel-major (out, in) padded weights for the finalize MLP.
    w1p = jnp.zeros((Crp, C), jnp.float32).at[:Cr, :].set(w1)
    b1p = jnp.zeros((Crp, 1), jnp.float32).at[:Cr, 0].set(b1)
    w2p = jnp.zeros((C, Crp), jnp.float32).at[:, :Cr].set(w2)
    b2p = b2.reshape(C, 1).astype(jnp.float32)

    T = _pick_streaming_tile(HW, C, itemsize, stream_block_bytes, budget)
    K = pl.cdiv(HW, T)

    # Phase 1: streamed spatial sum + per-sample excitation MLP -> (B, C, 1).
    scale = pl.pallas_call(
        functools.partial(_squeeze_excite_kernel, hw=HW, tile=T),
        out_shape=jax.ShapeDtypeStruct((B, C, 1), jnp.float32),
        grid_spec=pltpu.PrefetchScalarGridSpec(
            num_scalar_prefetch=0,
            grid=(B, K),
            in_specs=[
                pl.BlockSpec((1, C, T), lambda b, k: (b, 0, k)),
                pl.BlockSpec((Crp, C), lambda b, k: (0, 0)),
                pl.BlockSpec((Crp, 1), lambda b, k: (0, 0)),
                pl.BlockSpec((C, Crp), lambda b, k: (0, 0)),
                pl.BlockSpec((C, 1), lambda b, k: (0, 0)),
            ],
            out_specs=pl.BlockSpec((1, C, 1), lambda b, k: (b, 0, 0)),
            scratch_shapes=[pltpu.VMEM((C, 1), jnp.float32)],
        ),
        compiler_params=pltpu.CompilerParams(
            dimension_semantics=("parallel", "arbitrary"),
            vmem_limit_bytes=budget,
        ),
    )(x_flat, w1p, b1p, w2p, b2p)

    # Phase 2: channel-wise rescale, re-streaming x in lane-dense tiles.
    out = pl.pallas_call(
        _scale_kernel,
        out_shape=jax.ShapeDtypeStruct((B, C, HW), x_flat.dtype),
        grid_spec=pltpu.PrefetchScalarGridSpec(
            num_scalar_prefetch=0,
            grid=(B, K),
            in_specs=[
                pl.BlockSpec((1, C, T), lambda b, k: (b, 0, k)),
                pl.BlockSpec((1, C, 1), lambda b, k: (b, 0, 0)),
            ],
            out_specs=pl.BlockSpec((1, C, T), lambda b, k: (b, 0, k)),
        ),
        compiler_params=pltpu.CompilerParams(
            dimension_semantics=("parallel", "parallel"),
            vmem_limit_bytes=budget,
        ),
        input_output_aliases=io_alias,
    )(x_flat, scale)

    return out.reshape(B, C, H, W)


def se_block_reference(x, w1, b1, w2, b2):
    """Pure-JAX reference matching the PyTorch forward (weights (out, in))."""
    y = jnp.mean(x, axis=(2, 3))                       # AdaptiveAvgPool2d(1)
    y = jnp.maximum(y @ w1.T + b1, 0.0)                # Linear + ReLU
    y = jax.nn.sigmoid(y @ w2.T + b2)                  # Linear + Sigmoid
    return x * y[:, :, None, None]


if __name__ == "__main__":
    def make_inputs(key, B, C, H, W, reduction_ratio=16):
        Cr = max(1, C // reduction_ratio)
        k_x, k_w1, k_b1, k_w2, k_b2 = jax.random.split(key, 5)
        x = jax.random.normal(k_x, (B, C, H, W), dtype=jnp.float32)
        # nn.Linear weights in PyTorch (out, in) layout.
        w1 = jax.random.normal(k_w1, (Cr, C), dtype=jnp.float32) * 0.1
        b1 = jax.random.normal(k_b1, (Cr,), dtype=jnp.float32) * 0.1
        w2 = jax.random.normal(k_w2, (C, Cr), dtype=jnp.float32) * 0.1
        b2 = jax.random.normal(k_b2, (C,), dtype=jnp.float32) * 0.1
        return x, w1, b1, w2, b2

    root = jax.random.PRNGKey(0)
    k1, k2, k3 = jax.random.split(root, 3)

    # 1) Fused single-pass path (the common case).
    x, w1, b1, w2, b2 = make_inputs(k1, 2, 32, 16, 16)
    out = se_block(x, w1, b1, w2, b2)
    jax.block_until_ready(out)
    ref = se_block_reference(x, w1, b1, w2, b2)
    assert out.shape == x.shape
    assert jnp.allclose(out, ref, atol=1e-5, rtol=1e-5), "fused path mismatch"

    # 2) Fused path with a ragged spatial extent (HW not a multiple of 128).
    x, w1, b1, w2, b2 = make_inputs(k2, 2, 32, 10, 10)
    out = se_block(x, w1, b1, w2, b2)
    jax.block_until_ready(out)
    ref = se_block_reference(x, w1, b1, w2, b2)
    assert jnp.allclose(out, ref, atol=1e-5, rtol=1e-5), "ragged fused mismatch"

    # 3) Forced two-phase streaming fallback: multi-step HW reduction with a
    #    ragged last tile (HW = 400, T = 128 -> 4 steps, 16 valid lanes last).
    x, w1, b1, w2, b2 = make_inputs(k3, 2, 32, 20, 20)
    out = se_block(x, w1, b1, w2, b2, force_two_phase=True,
                   stream_block_bytes=16 * 1024)
    jax.block_until_ready(out)
    ref = se_block_reference(x, w1, b1, w2, b2)
    assert jnp.allclose(out, ref, atol=1e-5, rtol=1e-5), "two-phase mismatch"

    print("KERNEL_OK")
</pallas_src>

<mosaic_0001>
module attributes {stable_mosaic.version = 11 : i64} {
  func.func @_se_fused_kernel(%arg0: i32, %arg1: memref<2x32x256xf32, #tpu.memory_space<vmem>>, %arg2: memref<32x8xf32, #tpu.memory_space<vmem>>, %arg3: memref<1x8xf32, #tpu.memory_space<vmem>>, %arg4: memref<8x32xf32, #tpu.memory_space<vmem>>, %arg5: memref<1x32xf32, #tpu.memory_space<vmem>>, %arg6: memref<2x32x256xf32, #tpu.memory_space<vmem>>) attributes {dimension_semantics = [#tpu.dimension_semantics<parallel>], iteration_bounds = array<i64: 1>, scalar_prefetch = 0 : i64, scratch_operands = 0 : i64, tpu.core_type = #tpu.core_type<tc>, window_params = [{transform_indices = @transform_0, window_bounds = array<i64: 2, 32, 256>}, {pipeline_mode = #tpu.pipeline_mode<synchronous>, transform_indices = @transform_1, window_bounds = array<i64: 32, 8>}, {pipeline_mode = #tpu.pipeline_mode<synchronous>, transform_indices = @transform_2, window_bounds = array<i64: 1, 8>}, {pipeline_mode = #tpu.pipeline_mode<synchronous>, transform_indices = @transform_3, window_bounds = array<i64: 8, 32>}, {pipeline_mode = #tpu.pipeline_mode<synchronous>, transform_indices = @transform_4, window_bounds = array<i64: 1, 32>}, {transform_indices = @transform_5, window_bounds = array<i64: 2, 32, 256>}]} {
    %c0 = arith.constant 0 : index
    %c0_0 = arith.constant 0 : index
    %c0_1 = arith.constant 0 : index
    %0 = vector.load %arg1[%c0, %c0_0, %c0_1] : memref<2x32x256xf32, #tpu.memory_space<vmem>>, vector<2x32x256xf32>
    %cst = arith.constant dense<0.000000e+00> : vector<2x32xf32>
    %1 = vector.multi_reduction <add>, %0, %cst [2] : vector<2x32x256xf32> to vector<2x32xf32>
    %cst_2 = arith.constant 3.906250e-03 : f32
    %2 = vector.broadcast %cst_2 : f32 to vector<2x32xf32>
    %3 = arith.mulf %1, %2 : vector<2x32xf32>
    %c0_3 = arith.constant 0 : index
    %c0_4 = arith.constant 0 : index
    %4 = vector.load %arg2[%c0_3, %c0_4] : memref<32x8xf32, #tpu.memory_space<vmem>>, vector<32x8xf32>
    %cst_5 = arith.constant dense<0.000000e+00> : vector<2x8xf32>
    %5 = tpu.matmul %3, %4, %cst_5 {dimension_numbers = #tpu.dot_dimension_numbers<[1], [0], [0], [1], [0, 0, 1, 1], [], []>} : vector<2x32xf32>, vector<32x8xf32>, vector<2x8xf32> -> vector<2x8xf32>
    %c0_6 = arith.constant 0 : index
    %c0_7 = arith.constant 0 : index
    %6 = vector.load %arg3[%c0_6, %c0_7] : memref<1x8xf32, #tpu.memory_space<vmem>>, vector<1x8xf32>
    %7 = vector.broadcast %6 : vector<1x8xf32> to vector<2x8xf32>
    %8 = arith.addf %5, %7 : vector<2x8xf32>
    %cst_8 = arith.constant 0.000000e+00 : f32
    %9 = vector.broadcast %cst_8 : f32 to vector<2x8xf32>
    %10 = arith.maximumf %8, %9 : vector<2x8xf32>
    %c0_9 = arith.constant 0 : index
    %c0_10 = arith.constant 0 : index
    %11 = vector.load %arg4[%c0_9, %c0_10] : memref<8x32xf32, #tpu.memory_space<vmem>>, vector<8x32xf32>
    %cst_11 = arith.constant dense<0.000000e+00> : vector<2x32xf32>
    %12 = tpu.matmul %10, %11, %cst_11 {dimension_numbers = #tpu.dot_dimension_numbers<[1], [0], [0], [1], [0, 0, 1, 1], [], []>} : vector<2x8xf32>, vector<8x32xf32>, vector<2x32xf32> -> vector<2x32xf32>
    %c0_12 = arith.constant 0 : index
    %c0_13 = arith.constant 0 : index
    %13 = vector.load %arg5[%c0_12, %c0_13] : memref<1x32xf32, #tpu.memory_space<vmem>>, vector<1x32xf32>
    %14 = vector.broadcast %13 : vector<1x32xf32> to vector<2x32xf32>
    %15 = arith.addf %12, %14 : vector<2x32xf32>
    %16 = arith.negf %15 : vector<2x32xf32>
    %17 = math.exp %16 : vector<2x32xf32>
    %cst_14 = arith.constant 1.000000e+00 : f32
    %18 = vector.broadcast %cst_14 : f32 to vector<2x32xf32>
    %19 = arith.addf %18, %17 : vector<2x32xf32>
    %20 = arith.divf %18, %19 : vector<2x32xf32>
    %21 = vector.shape_cast %20 : vector<2x32xf32> to vector<2x32x1xf32>
    %22 = vector.broadcast %21 : vector<2x32x1xf32> to vector<2x32x256xf32>
    %23 = arith.mulf %0, %22 : vector<2x32x256xf32>
    %c0_15 = arith.constant 0 : index
    %c0_16 = arith.constant 0 : index
    %c0_17 = arith.constant 0 : index
    %24 = vector.load %arg6[%c0_15, %c0_16, %c0_17] : memref<2x32x256xf32, #tpu.memory_space<vmem>>, vector<2x32x256xf32>
    tpu.vector_store %arg6[%c0_15, %c0_16, %c0_17], %23 {strides = array<i32>} : memref<2x32x256xf32, #tpu.memory_space<vmem>>, vector<2x32x256xf32>,
    return
  }
  func.func @transform_0(%arg0: i32) -> (i32, i32, i32) {
    %c0_i32 = arith.constant 0 : i32
    %c0_i32_0 = arith.constant 0 : i32
    %c0_i32_1 = arith.constant 0 : i32
    return %arg0, %c0_i32, %c0_i32_0 : i32, i32, i32
  }
  func.func @transform_1(%arg0: i32) -> (i32, i32) {
    %c0_i32 = arith.constant 0 : i32
    %c0_i32_0 = arith.constant 0 : i32
    %c0_i32_1 = arith.constant 0 : i32
    return %c0_i32, %c0_i32_0 : i32, i32
  }
  func.func @transform_2(%arg0: i32) -> (i32, i32) {
    %c0_i32 = arith.constant 0 : i32
    %c0_i32_0 = arith.constant 0 : i32
    %c0_i32_1 = arith.constant 0 : i32
    return %c0_i32, %c0_i32_0 : i32, i32
  }
  func.func @transform_3(%arg0: i32) -> (i32, i32) {
    %c0_i32 = arith.constant 0 : i32
    %c0_i32_0 = arith.constant 0 : i32
    %c0_i32_1 = arith.constant 0 : i32
    return %c0_i32, %c0_i32_0 : i32, i32
  }
  func.func @transform_4(%arg0: i32) -> (i32, i32) {
    %c0_i32 = arith.constant 0 : i32
    %c0_i32_0 = arith.constant 0 : i32
    %c0_i32_1 = arith.constant 0 : i32
    return %c0_i32, %c0_i32_0 : i32, i32
  }
  func.func @transform_5(%arg0: i32) -> (i32, i32, i32) {
    %c0_i32 = arith.constant 0 : i32
    %c0_i32_0 = arith.constant 0 : i32
    %c0_i32_1 = arith.constant 0 : i32
    return %arg0, %c0_i32, %c0_i32_0 : i32, i32, i32
  }
}

</mosaic_0001>

<llo_original>
// kernel: tpu_custom_call.1
$region0: #{tpu_custom_call.1}
  #allocation0 [shape = 'u32[]', space=smem, size = 0x4, offset = 0x4, fixed_abs, tag = 'smem constant byte address 0x4 - core index']
  #allocation1 [shape = 'u32[144,128]{1,0:T(1,128)}', space=vmem, size = 0x12000, scoped, tag = 'internal scratch']
  %s0 = inlined_call_operand.hbm [shape: f32[2,32,256], index: 0, kind: input, shape index: {}]
  %s1 = inlined_call_operand.vmem [shape: f32[32,8], index: 1, kind: input, shape index: {}]
  %s2 = inlined_call_operand.vmem [shape: f32[1,8], index: 2, kind: input, shape index: {}]
  %s3 = inlined_call_operand.vmem [shape: f32[8,32], index: 3, kind: input, shape index: {}]
  %s4 = inlined_call_operand.vmem [shape: f32[1,32], index: 4, kind: input, shape index: {}]
  %s5 = inlined_call_operand.hbm [shape: f32[2,32,256], index: 5, kind: output, shape index: {}]
  %s6 = sld [smem:[#allocation0]]
  $region34: #{tpu_custom_call.1} parent=0
    _
  %s8 = ssub.s32 1, %s6
  %s9 = scalar_select 0, %s8, %s6
  $region1: #{tpu_custom_call.1} parent=0
    #allocation2 [shape = 'u8[65536]{0}', space=vmem, size = 0x10000, scoped, tag = 'input window, operand 0, single buffered']
    #allocation3 [shape = 's32[1]{0}', space=sflag, size = 0x4, scoped, tag = 'scoped memory for tpu_custom_call.1']
    #allocation4 [shape = 's32[1]{0}', space=sflag, size = 0x4, scoped, tag = 'scoped memory for tpu_custom_call.1']
    #allocation5 [shape = 'u8[65536]{0}', space=vmem, size = 0x10000, scoped, tag = 'output window, operand 0, single buffered']
    %10 = vsyncpa [#allocation3], 0
    %11 = vsyncpa [#allocation4], 0
    // Predicated region
    $region2: #{tpu_custom_call.1} parent=1 // pred_check
      _
    $region3: #{tpu_custom_call.1} parent=1 // pred_check_branch
      %13 = sbr.rel (0) target = $region5
    $region4: #{tpu_custom_call.1} parent=1 // pred_region
      %s15 = ssub.s32 2048, 2048
      %16 = vsyncadd [#allocation3], %s15
      %s17 = sshll.u32 [#allocation2], 4
      %s18 = int_to_ptr.vmem [resolvable:$true] %s17
      %23 = dma.hbm_to_vmem [thread:$0]  %s0, 2048, %s18, [#allocation3], 256, 256, 16
    $region5: #{tpu_custom_call.1} parent=1 // pred_fallthru
      _
    // Predicated region
    $region6: #{tpu_custom_call.1} parent=1 // pred_check
      _
    $region7: #{tpu_custom_call.1} parent=1 // pred_check_branch
      %25 = sbr.rel (0) target = $region9
    $region8: #{tpu_custom_call.1} parent=1 // pred_region
      _
    $region9: #{tpu_custom_call.1} parent=1 // pred_fallthru
      _
    // Predicated region
    $region10: #{tpu_custom_call.1} parent=1 // pred_check
      _
    $region11: #{tpu_custom_call.1} parent=1 // pred_check_branch
      %27 = sbr.rel (0) target = $region13
    $region12: #{tpu_custom_call.1} parent=1 // pred_region
      _
    $region13: #{tpu_custom_call.1} parent=1 // pred_fallthru
      _
    // Predicated region
    $region14: #{tpu_custom_call.1} parent=1 // pred_check
      _
    $region15: #{tpu_custom_call.1} parent=1 // pred_check_branch
      %29 = sbr.rel (0) target = $region17
    $region16: #{tpu_custom_call.1} parent=1 // pred_region
      _
    $region17: #{tpu_custom_call.1} parent=1 // pred_fallthru
      _
    // Predicated region
    $region18: #{tpu_custom_call.1} parent=1 // pred_check
      _
    $region19: #{tpu_custom_call.1} parent=1 // pred_check_branch
      %31 = sbr.rel (0) target = $region21
    $region20: #{tpu_custom_call.1} parent=1 // pred_region
      _
    $region21: #{tpu_custom_call.1} parent=1 // pred_fallthru
      _
    // Predicated region
    $region22: #{tpu_custom_call.1} parent=1 // pred_check
      _
    $region23: #{tpu_custom_call.1} parent=1 // pred_check_branch
      %33 = sbr.rel (0) target = $region25
    $region24: #{tpu_custom_call.1} parent=1 // pred_region
      %34 = dma.done [#allocation3], 2048
    $region25: #{tpu_custom_call.1} parent=1 // pred_fallthru
      _
    %v35 = vld [vmem:[#allocation2] sm:$0xff]
    %v36 = vld [vmem:[#allocation2 + $0x8] sm:$0xff]
    %v37 = vld [vmem:[#allocation2 + $0x10] sm:$0xff]
    %v38 = vld [vmem:[#allocation2 + $0x18] sm:$0xff]
    %v39 = vld [vmem:[#allocation2 + $0x20] sm:$0xff]
    %v40 = vld [vmem:[#allocation2 + $0x28] sm:$0xff]
    %v41 = vld [vmem:[#allocation2 + $0x30] sm:$0xff]
    %v42 = vld [vmem:[#allocation2 + $0x38] sm:$0xff]
    %v43 = vld [vmem:[#allocation2 + $0x40] sm:$0xff]
    %v44 = vld [vmem:[#allocation2 + $0x48] sm:$0xff]
    %v45 = vld [vmem:[#allocation2 + $0x50] sm:$0xff]
    %v46 = vld [vmem:[#allocation2 + $0x58] sm:$0xff]
    %v47 = vld [vmem:[#allocation2 + $0x60] sm:$0xff]
    %v48 = vld [vmem:[#allocation2 + $0x68] sm:$0xff]
    %v49 = vld [vmem:[#allocation2 + $0x70] sm:$0xff]
    %v50 = vld [vmem:[#allocation2 + $0x78] sm:$0xff]
    %v51 = vadd.f32 %v35, %v36
    %52 = vadd.xlane.f32.xlu0 %v51
    %v53 = vpop.xlane.xlu0 %52
    %v54 = vadd.f32 %v37, %v38
    %55 = vadd.xlane.f32.xlu0 %v54
    %v56 = vpop.xlane.xlu0 %55
    %v57 = vadd.f32 %v39, %v40
    %58 = vadd.xlane.f32.xlu0 %v57
    %v59 = vpop.xlane.xlu0 %58
    %v60 = vadd.f32 %v41, %v42
    %61 = vadd.xlane.f32.xlu0 %v60
    %v62 = vpop.xlane.xlu0 %61
    %v63 = vadd.f32 %v43, %v44
    %64 = vadd.xlane.f32.xlu0 %v63
    %v65 = vpop.xlane.xlu0 %64
    %v66 = vadd.f32 %v45, %v46
    %67 = vadd.xlane.f32.xlu0 %v66
    %v68 = vpop.xlane.xlu0 %67
    %v69 = vadd.f32 %v47, %v48
    %70 = vadd.xlane.f32.xlu0 %v69
    %v71 = vpop.xlane.xlu0 %70
    %v72 = vadd.f32 %v49, %v50
    %73 = vadd.xlane.f32.xlu0 %v72
    %v74 = vpop.xlane.xlu0 %73
    %v75 = vmul.f32 %v53, 0.00390625
    %v76 = vmul.f32 %v56, 0.00390625
    %v77 = vmul.f32 %v59, 0.00390625
    %v78 = vmul.f32 %v62, 0.00390625
    %v79 = vmul.f32 %v65, 0.00390625
    %v80 = vmul.f32 %v68, 0.00390625
    %v81 = vmul.f32 %v71, 0.00390625
    %v82 = vmul.f32 %v74, 0.00390625
    %v83 = vld [vmem:[%s1] sm:$0xff]
    %v84 = vld [vmem:[%s1 + $0x8] sm:$0xff]
    %v85 = vld [vmem:[%s1 + $0x10] sm:$0xff]
    %v86 = vld [vmem:[%s1 + $0x18] sm:$0xff]
    %v87 = vld [vmem:[%s2] sm:$0x1]
    %v89 = vlaneseq
    %v90 = vshrl.u32 %v89, 7
    %v91 = vsub.s32 0, %v90
    %v92 = vrot.slane %v87, %v91
    %v102 = vlaneseq
    %v103 = vand.u32 %v102, 127
    %v104 = vlaneseq
    %v105 = vshrl.u32 %v104, 7
    %v106 = vsub.s32 %v103, %v105
    %v107 = vrot.slane %v75, %v106
    %v108 = vadd.s32 %v103, 4294967288
    %v109 = vlaneseq
    %v110 = vshrl.u32 %v109, 7
    %v111 = vsub.s32 %v108, %v110
    %v112 = vrot.slane %v76, %v111
    %vm113 = vcmask 130112
    %v114 = vsel %vm113, %v112, %v107
    %v115 = vadd.s32 %v103, 4294967280
    %v116 = vlaneseq
    %v117 = vshrl.u32 %v116, 7
    %v118 = vsub.s32 %v115, %v117
    %v119 = vrot.slane %v77, %v118
    %vm120 = vcmask 195712
    %v121 = vsel %vm120, %v119, %v114
    %v122 = vadd.s32 %v103, 4294967272
    %v123 = vlaneseq
    %v124 = vshrl.u32 %v123, 7
    %v125 = vsub.s32 %v122, %v124
    %v126 = vrot.slane %v78, %v125
    %vm127 = vcmask 261312
    %v128 = vsel %vm127, %v126, %v121
    %v129 = vlaneseq
    %v130 = vshrl.u32 %v129, 7
    %v131 = vsub.s32 %v103, %v130
    %v132 = vrot.slane %v79, %v131
    %v133 = vlaneseq
    %v134 = vshrl.u32 %v133, 7
    %v135 = vsub.s32 %v108, %v134
    %v136 = vrot.slane %v80, %v135
    %v137 = vsel %vm113, %v136, %v132
    %v138 = vlaneseq
    %v139 = vshrl.u32 %v138, 7
    %v140 = vsub.s32 %v115, %v139
    %v141 = vrot.slane %v81, %v140
    %v142 = vsel %vm120, %v141, %v137
    %v143 = vlaneseq
    %v144 = vshrl.u32 %v143, 7
    %v145 = vsub.s32 %v122, %v144
    %v146 = vrot.slane %v82, %v145
    %v147 = vsel %vm127, %v146, %v142
    %vm148 = vcmask 1041409
    %v149 = vsel %vm148, %v147, %v128
    %vm150 = vcmask 261120
    %v151 = vsel %vm150, %v149, 0
    %153 = vmatprep.subr.mxu0 0.0
    %154 = vmatpush1.msra.mxu0 %v83
    %155 = vmatprep.subr.mxu0 0.0
    %156 = vmatpush1.msra.mxu0 %v84
    %157 = vmatprep.subr.mxu0 0.0
    %158 = vmatpush1.msra.mxu0 %v85
    %159 = vmatprep.subr.mxu0 0.0
    %160 = vmatpush1.msra.mxu0 %v86
    %161 = vmatprep.subr.mxu0 0.0
    %162 = vmatpush1.msra.mxu0 0.0
    %163 = vmatprep.subr.mxu0 0.0
    %164 = vmatpush1.msra.mxu0 0.0
    %165 = vmatprep.subr.mxu0 0.0
    %166 = vmatpush1.msra.mxu0 0.0
    %167 = vmatprep.subr.mxu0 0.0
    %168 = vmatpush1.msra.mxu0 0.0
    %169 = vmatprep.subr.mxu0 0.0
    %170 = vmatpush1.msra.mxu0 0.0
    %171 = vmatprep.subr.mxu0 0.0
    %172 = vmatpush1.msra.mxu0 0.0
    %173 = vmatprep.subr.mxu0 0.0
    %174 = vmatpush1.msra.mxu0 0.0
    %175 = vmatprep.subr.mxu0 0.0
    %176 = vmatpush1.msra.mxu0 0.0
    %177 = vmatprep.subr.mxu0 0.0
    %178 = vmatpush1.msra.mxu0 0.0
    %179 = vmatprep.subr.mxu0 0.0
    %180 = vmatpush1.msra.mxu0 0.0
    %181 = vmatprep.subr.mxu0 0.0
    %182 = vmatpush1.msra.mxu0 0.0
    %183 = vmatprep.subr.mxu0 0.0
    %184 = vmatpush1.msra.mxu0 0.0
    %185 = vmatprep.subr.mxu0 0.0
    %186 = vmatpush1.msra.mxu0 0.0
    %187 = vmatprep.subr.mxu0 0.0
    %188 = vmatpush1.msra.mxu0 0.0
    %189 = vmatprep.subr.mxu0 0.0
    %190 = vmatpush1.msra.mxu0 0.0
    %191 = vmatprep.subr.mxu0 0.0
    %192 = vmatpush1.msra.mxu0 0.0
    %193 = vmatprep.subr.mxu0 0.0
    %194 = vmatpush1.msra.mxu0 0.0
    %195 = vmatprep.subr.mxu0 0.0
    %196 = vmatpush1.msra.mxu0 0.0
    %197 = vmatprep.subr.mxu0 0.0
    %198 = vmatpush1.msra.mxu0 0.0
    %199 = vmatprep.subr.mxu0 0.0
    %200 = vmatpush1.msra.mxu0 0.0
    %201 = vmatprep.subr.mxu0 0.0
    %202 = vmatpush1.msra.mxu0 0.0
    %203 = vmatprep.subr.mxu0 0.0
    %204 = vmatpush1.msra.mxu0 0.0
    %205 = vmatprep.subr.mxu0 0.0
    %206 = vmatpush1.msra.mxu0 0.0
    %207 = vmatprep.subr.mxu0 0.0
    %208 = vmatpush1.msra.mxu0 0.0
    %209 = vmatprep.subr.mxu0 0.0
    %210 = vmatpush1.msra.mxu0 0.0
    %211 = vmatprep.subr.mxu0 0.0
    %212 = vmatpush1.msra.mxu0 0.0
    %213 = vmatprep.subr.mxu0 0.0
    %214 = vmatpush1.msra.mxu0 0.0
    %215 = vmatprep.subr.mxu0 0.0
    %216 = vmatpush1.msra.mxu0 0.0
    %217 = vmatprep.mubr.f32.mxu0 0.0
    %218 = vmatmul.mubr.f32.gmra.mrb[0].mxu0 %v151
    %v219 = vpop.f32.mrb[0].mxu0
    %v220 = vadd.f32 %v92, %v219
    %v221 = vpop.f32.mrb[0].mxu0
    %222 = vdwg.mxu0
    %v223 = vmax.f32 %v220, 0.0
    %v224 = vld [vmem:[%s3] sm:$0xff]
    %v225 = vld [vmem:[%s4] sm:$0x1]
    %v227 = vlaneseq
    %v228 = vshrl.u32 %v227, 7
    %v229 = vsub.s32 0, %v228
    %v230 = vrot.slane %v225, %v229
    %vm232 = vcmask 64512
    %v234 = vsel %vm232, %v223, 0
    %236 = vmatprep.subr.mxu0 0.0
    %237 = vmatpush1.msra.mxu0 %v224
    %238 = vmatprep.subr.mxu0 0.0
    %239 = vmatpush1.msra.mxu0 0.0
    %240 = vmatprep.subr.mxu0 0.0
    %241 = vmatpush1.msra.mxu0 0.0
    %242 = vmatprep.subr.mxu0 0.0
    %243 = vmatpush1.msra.mxu0 0.0
    %244 = vmatprep.subr.mxu0 0.0
    %245 = vmatpush1.msra.mxu0 0.0
    %246 = vmatprep.subr.mxu0 0.0
    %247 = vmatpush1.msra.mxu0 0.0
    %248 = vmatprep.subr.mxu0 0.0
    %249 = vmatpush1.msra.mxu0 0.0
    %250 = vmatprep.subr.mxu0 0.0
    %251 = vmatpush1.msra.mxu0 0.0
    %252 = vmatprep.subr.mxu0 0.0
    %253 = vmatpush1.msra.mxu0 0.0
    %254 = vmatprep.subr.mxu0 0.0
    %255 = vmatpush1.msra.mxu0 0.0
    %256 = vmatprep.subr.mxu0 0.0
    %257 = vmatpush1.msra.mxu0 0.0
    %258 = vmatprep.subr.mxu0 0.0
    %259 = vmatpush1.msra.mxu0 0.0
    %260 = vmatprep.subr.mxu0 0.0
    %261 = vmatpush1.msra.mxu0 0.0
    %262 = vmatprep.subr.mxu0 0.0
    %263 = vmatpush1.msra.mxu0 0.0
    %264 = vmatprep.subr.mxu0 0.0
    %265 = vmatpush1.msra.mxu0 0.0
    %266 = vmatprep.subr.mxu0 0.0
    %267 = vmatpush1.msra.mxu0 0.0
    %268 = vmatprep.subr.mxu0 0.0
    %269 = vmatpush1.msra.mxu0 0.0
    %270 = vmatprep.subr.mxu0 0.0
    %271 = vmatpush1.msra.mxu0 0.0
    %272 = vmatprep.subr.mxu0 0.0
    %273 = vmatpush1.msra.mxu0 0.0
    %274 = vmatprep.subr.mxu0 0.0
    %275 = vmatpush1.msra.mxu0 0.0
    %276 = vmatprep.subr.mxu0 0.0
    %277 = vmatpush1.msra.mxu0 0.0
    %278 = vmatprep.subr.mxu0 0.0
    %279 = vmatpush1.msra.mxu0 0.0
    %280 = vmatprep.subr.mxu0 0.0
    %281 = vmatpush1.msra.mxu0 0.0
    %282 = vmatprep.subr.mxu0 0.0
    %283 = vmatpush1.msra.mxu0 0.0
    %284 = vmatprep.subr.mxu0 0.0
    %285 = vmatpush1.msra.mxu0 0.0
    %286 = vmatprep.subr.mxu0 0.0
    %287 = vmatpush1.msra.mxu0 0.0
    %288 = vmatprep.subr.mxu0 0.0
    %289 = vmatpush1.msra.mxu0 0.0
    %290 = vmatprep.subr.mxu0 0.0
    %291 = vmatpush1.msra.mxu0 0.0
    %292 = vmatprep.subr.mxu0 0.0
    %293 = vmatpush1.msra.mxu0 0.0
    %294 = vmatprep.subr.mxu0 0.0
    %295 = vmatpush1.msra.mxu0 0.0
    %296 = vmatprep.subr.mxu0 0.0
    %297 = vmatpush1.msra.mxu0 0.0
    %298 = vmatprep.subr.mxu0 0.0
    %299 = vmatpush1.msra.mxu0 0.0
    %300 = vmatprep.mubr.f32.mxu0 0.0
    %301 = vmatmul.mubr.f32.gmra.mrb[0].mxu0 %v234
    %v302 = vpop.f32.mrb[0].mxu0
    %v303 = vadd.f32 %v230, %v302
    %v304 = vpop.f32.mrb[0].mxu0
    %305 = vdwg.mxu0
    %v306 = vxor.u32 %v303, 2147483648
    %v307 = vmul.f32 %v306, 1.442695
    %v308 = vpow.pop %v307
    %v309 = vadd.f32 %v308, 1.0
    %v310 = vrcp.pop %v309
    %v311 = vmul.f32 1.0, %v310
    %v312 = vlaneseq
    %v313 = vshrl.u32 %v312, 7
    %v314 = vsub.s32 0, %v313
    %v315 = vrot.slane %v311, %v314
    %317 = vbcast.lane.b32.xlu0 %v315, 256
    %v318 = vpop.permute.xlu0 %317
    %s320 = sor.u32 256, 8
    %321 = vbcast.lane.b32.xlu0 %v315, %s320
    %v322 = vpop.permute.xlu0 %321
    %s324 = sor.u32 256, 16
    %325 = vbcast.lane.b32.xlu0 %v315, %s324
    %v326 = vpop.permute.xlu0 %325
    %s328 = sor.u32 256, 24
    %329 = vbcast.lane.b32.xlu0 %v315, %s328
    %v330 = vpop.permute.xlu0 %329
    %v331 = vlaneseq
    %v332 = vshrl.u32 %v331, 7
    %v333 = vsub.s32 1, %v332
    %v334 = vrot.slane %v311, %v333
    %336 = vbcast.lane.b32.xlu0 %v334, 256
    %v337 = vpop.permute.xlu0 %336
    %s339 = sor.u32 256, 8
    %340 = vbcast.lane.b32.xlu0 %v334, %s339
    %v341 = vpop.permute.xlu0 %340
    %s343 = sor.u32 256, 16
    %344 = vbcast.lane.b32.xlu0 %v334, %s343
    %v345 = vpop.permute.xlu0 %344
    %s347 = sor.u32 256, 24
    %348 = vbcast.lane.b32.xlu0 %v334, %s347
    %v349 = vpop.permute.xlu0 %348
    %v350 = vmul.f32 %v35, %v318
    %v351 = vmul.f32 %v36, %v318
    %v352 = vmul.f32 %v37, %v322
    %v353 = vmul.f32 %v38, %v322
    %v354 = vmul.f32 %v39, %v326
    %v355 = vmul.f32 %v40, %v326
    %v356 = vmul.f32 %v41, %v330
    %v357 = vmul.f32 %v42, %v330
    %v358 = vmul.f32 %v43, %v337
    %v359 = vmul.f32 %v44, %v337
    %v360 = vmul.f32 %v45, %v341
    %v361 = vmul.f32 %v46, %v341
    %v362 = vmul.f32 %v47, %v345
    %v363 = vmul.f32 %v48, %v345
    %v364 = vmul.f32 %v49, %v349
    %v365 = vmul.f32 %v50, %v349
    %366 = vst [vmem:[#allocation5] sm:$0xff] %v350
    %367 = vst [vmem:[#allocation5 + $0x8] sm:$0xff] %v351
    %368 = vst [vmem:[#allocation5 + $0x10] sm:$0xff] %v352
    %369 = vst [vmem:[#allocation5 + $0x18] sm:$0xff] %v353
    %370 = vst [vmem:[#allocation5 + $0x20] sm:$0xff] %v354
    %371 = vst [vmem:[#allocation5 + $0x28] sm:$0xff] %v355
    %372 = vst [vmem:[#allocation5 + $0x30] sm:$0xff] %v356
    %373 = vst [vmem:[#allocation5 + $0x38] sm:$0xff] %v357
    %374 = vst [vmem:[#allocation5 + $0x40] sm:$0xff] %v358
    %375 = vst [vmem:[#allocation5 + $0x48] sm:$0xff] %v359
    %376 = vst [vmem:[#allocation5 + $0x50] sm:$0xff] %v360
    %377 = vst [vmem:[#allocation5 + $0x58] sm:$0xff] %v361
    %378 = vst [vmem:[#allocation5 + $0x60] sm:$0xff] %v362
    %379 = vst [vmem:[#allocation5 + $0x68] sm:$0xff] %v363
    %380 = vst [vmem:[#allocation5 + $0x70] sm:$0xff] %v364
    %381 = vst [vmem:[#allocation5 + $0x78] sm:$0xff] %v365
    // Predicated region
    $region26: #{tpu_custom_call.1} parent=1 // pred_check
      _
    $region27: #{tpu_custom_call.1} parent=1 // pred_check_branch
      %383 = sbr.rel (0) target = $region29
    $region28: #{tpu_custom_call.1} parent=1 // pred_region
      %s385 = ssub.s32 2048, 2048
      %386 = vsyncadd [#allocation4], %s385
      %s387 = sshll.u32 [#allocation5], 4
      %s388 = int_to_ptr.vmem [resolvable:$true] %s387
      %393 = dma.vmem_to_hbm [thread:$0]  %s388, 2048, %s5, [#allocation4], 256, 256, 16
    $region29: #{tpu_custom_call.1} parent=1 // pred_fallthru
      _
    // Predicated region
    $region30: #{tpu_custom_call.1} parent=1 // pred_check
      _
    $region31: #{tpu_custom_call.1} parent=1 // pred_check_branch
      %395 = sbr.rel (0) target = $region33
    $region32: #{tpu_custom_call.1} parent=1 // pred_region
      %396 = dma.done [#allocation4], 2048
    $region33: #{tpu_custom_call.1} parent=1 // pred_fallthru
      _
    %397 = vsyncpa [#allocation3], 1
    %398 = vsyncpa [#allocation4], 1

</llo_original>
